<compile_context>
chip_gen: v5e
topology: v5e:2x2
jax: 0.10.0
libtpu: 0.0.40
codegen_flags: <defaults>
</compile_context>

<pallas_src>
import functools

import jax
import jax.numpy as jnp
from jax.experimental import pallas as pl
from jax.experimental.pallas import tpu as pltpu


def _scaled_identity_kernel(x_ref, o_ref, *, scale, seq_op_in_fp32):
    x = x_ref[...]
    if seq_op_in_fp32:
        x = x.astype(jnp.float32)
    # elementwise hot path on the VPU; hidden under the HBM<->VMEM DMA.
    o_ref[...] = (x * scale).astype(o_ref.dtype)


def scaled_identity(
    inputs,
    attention_mask=None,
    *,
    seq_op_in_fp32=True,
    donate_input=False,
    block_bytes=2 * 1024 * 1024,
):
    """Pallas implementation of ScaledIdentity.forward."""
    del attention_mask  # unused, matches the PyTorch module
    b, s, d = inputs.shape
    # torch.as_tensor(shape[2]).rsqrt() -> computed in float32
    scale = float(jnp.asarray(d, jnp.float32) ** -0.5)

    dtype = inputs.dtype
    itemsize = jnp.dtype(dtype).itemsize
    total = b * s * d

    # --- choose a lane-dense 2-D view (rows, C), C a multiple of 128 -------
    if total % 128 == 0:
        lanes = 128
        while lanes * 2 <= 2048 and total % (lanes * 2) == 0:
            lanes *= 2
    else:
        # Fallback: keep d as the lane axis (masked partial stores, but
        # correct).  Only hit for shapes whose total size isn't 128-aligned.
        lanes = d
    rows = total // lanes
    x2d = inputs.reshape(rows, lanes)

    # --- row tiling: ~block_bytes per block, sublane-packing aligned -------
    pack = max(8, 32 // itemsize)  # 8 for f32, 16 for bf16, 32 for int8/fp8
    rows_per_block = (block_bytes // (lanes * itemsize)) // pack * pack
    rows_per_block = max(pack, rows_per_block)
    tile_rows = rows if rows_per_block >= rows else rows_per_block

    grid = (pl.cdiv(rows, tile_rows),)

    kernel = functools.partial(
        _scaled_identity_kernel, scale=scale, seq_op_in_fp32=seq_op_in_fp32
    )

    out2d = pl.pallas_call(
        kernel,
        out_shape=jax.ShapeDtypeStruct((rows, lanes), dtype),
        grid_spec=pltpu.PrefetchScalarGridSpec(
            num_scalar_prefetch=0,
            grid=grid,
            in_specs=[pl.BlockSpec((tile_rows, lanes), lambda i: (i, 0))],
            out_specs=pl.BlockSpec((tile_rows, lanes), lambda i: (i, 0)),
        ),
        compiler_params=pltpu.CompilerParams(
            dimension_semantics=("parallel",)
        ),
        input_output_aliases=({0: 0} if donate_input else {}),
    )(x2d)

    return out2d.reshape(b, s, d)


if __name__ == "__main__":
    key = jax.random.PRNGKey(0)

    # --- main check: bf16, module-sized shape, fp32 seq op -----------------
    batch, seq, hidden = 2, 8, 32
    x = jax.random.normal(key, (batch, seq, hidden), dtype=jnp.float32).astype(
        jnp.bfloat16
    )
    scale = float(jnp.float32(hidden) ** -0.5)

    out = scaled_identity(x, seq_op_in_fp32=True)
    jax.block_until_ready(out)
    ref = (x.astype(jnp.float32) * scale).astype(x.dtype)
    assert out.shape == x.shape and out.dtype == x.dtype
    assert jnp.allclose(
        out.astype(jnp.float32), ref.astype(jnp.float32), atol=1e-2, rtol=1e-2
    )

    # --- donated-input path (input buffer aliased to output) ---------------
    x_don = x + jnp.bfloat16(0.0)  # fresh buffer safe to overwrite
    out_don = scaled_identity(x_don, seq_op_in_fp32=True, donate_input=True)
    jax.block_until_ready(out_don)
    assert jnp.allclose(
        out_don.astype(jnp.float32), ref.astype(jnp.float32), atol=1e-2, rtol=1e-2
    )

    # --- f32, multi-block grid with a partial last block (tiny block_bytes) -
    k2 = jax.random.PRNGKey(1)
    x2 = jax.random.normal(k2, (2, 72, 96), dtype=jnp.float32)
    out2 = scaled_identity(x2, seq_op_in_fp32=True, block_bytes=4096)
    jax.block_until_ready(out2)
    ref2 = x2 * float(jnp.float32(96) ** -0.5)
    assert jnp.allclose(out2, ref2, atol=1e-6, rtol=1e-6)

    # --- seq_op_in_fp32=False path + non-128-aligned fallback layout -------
    k3 = jax.random.PRNGKey(2)
    x3 = jax.random.normal(k3, (2, 3, 5), dtype=jnp.float32).astype(jnp.bfloat16)
    out3 = scaled_identity(x3, seq_op_in_fp32=False)
    jax.block_until_ready(out3)
    ref3 = (x3 * float(jnp.float32(5) ** -0.5)).astype(x3.dtype)
    assert out3.shape == x3.shape and out3.dtype == x3.dtype
    assert jnp.allclose(
        out3.astype(jnp.float32), ref3.astype(jnp.float32), atol=2e-2, rtol=2e-2
    )

    print("KERNEL_OK")
</pallas_src>

<mosaic_0001>
module attributes {stable_mosaic.version = 11 : i64} {
  func.func @_scaled_identity_kernel(%arg0: i32, %arg1: memref<1x512xbf16, #tpu.memory_space<vmem>>, %arg2: memref<1x512xbf16, #tpu.memory_space<vmem>>) attributes {dimension_semantics = [#tpu.dimension_semantics<parallel>], iteration_bounds = array<i64: 1>, scalar_prefetch = 0 : i64, scratch_operands = 0 : i64, tpu.core_type = #tpu.core_type<tc>, window_params = [{transform_indices = @transform_0, window_bounds = array<i64: 1, 512>}, {transform_indices = @transform_1, window_bounds = array<i64: 1, 512>}]} {
    %c0 = arith.constant 0 : index
    %c0_0 = arith.constant 0 : index
    %0 = vector.load %arg1[%c0, %c0_0] : memref<1x512xbf16, #tpu.memory_space<vmem>>, vector<1x512xbf16>
    %1 = arith.extf %0 : vector<1x512xbf16> to vector<1x512xf32>
    %cst = arith.constant 0.176776692 : f32
    %2 = vector.broadcast %cst : f32 to vector<1x512xf32>
    %3 = arith.mulf %1, %2 : vector<1x512xf32>
    %4 = arith.truncf %3 : vector<1x512xf32> to vector<1x512xbf16>
    %c0_1 = arith.constant 0 : index
    %c0_2 = arith.constant 0 : index
    %5 = vector.load %arg2[%c0_1, %c0_2] : memref<1x512xbf16, #tpu.memory_space<vmem>>, vector<1x512xbf16>
    tpu.vector_store %arg2[%c0_1, %c0_2], %4 {strides = array<i32>} : memref<1x512xbf16, #tpu.memory_space<vmem>>, vector<1x512xbf16>,
    return
  }
  func.func @transform_0(%arg0: i32) -> (i32, i32) {
    %c0_i32 = arith.constant 0 : i32
    %c0_i32_0 = arith.constant 0 : i32
    return %arg0, %c0_i32 : i32, i32
  }
  func.func @transform_1(%arg0: i32) -> (i32, i32) {
    %c0_i32 = arith.constant 0 : i32
    %c0_i32_0 = arith.constant 0 : i32
    return %arg0, %c0_i32 : i32, i32
  }
}

</mosaic_0001>

<llo_original>
// kernel: tpu_custom_call.1
$region0: #{tpu_custom_call.1}
  #allocation0 [shape = 'u32[]', space=smem, size = 0x4, offset = 0x4, fixed_abs, tag = 'smem constant byte address 0x4 - core index']
  #allocation1 [shape = 'u32[72,128]{1,0:T(1,128)}', space=vmem, size = 0x9000, scoped, tag = 'internal scratch']
  %s0 = inlined_call_operand.hbm [shape: bf16[1,512], index: 0, kind: input, shape index: {}]
  %s1 = inlined_call_operand.hbm [shape: bf16[1,512], index: 1, kind: output, shape index: {}]
  %s2 = sld [smem:[#allocation0]]
  $region18: #{tpu_custom_call.1} parent=0
    _
  %s4 = ssub.s32 1, %s2
  %s5 = scalar_select 0, %s4, %s2
  $region1: #{tpu_custom_call.1} parent=0
    #allocation2 [shape = 'u8[2048]{0}', space=vmem, size = 0x800, scoped, tag = 'input window, operand 0, single buffered']
    #allocation3 [shape = 's32[1]{0}', space=sflag, size = 0x4, scoped, tag = 'scoped memory for tpu_custom_call.1']
    #allocation4 [shape = 's32[1]{0}', space=sflag, size = 0x4, scoped, tag = 'scoped memory for tpu_custom_call.1']
    #allocation5 [shape = 'u8[2048]{0}', space=vmem, size = 0x800, scoped, tag = 'output window, operand 0, single buffered']
    %6 = vsyncpa [#allocation3], 0
    %7 = vsyncpa [#allocation4], 0
    // Predicated region
    $region2: #{tpu_custom_call.1} parent=1 // pred_check
      _
    $region3: #{tpu_custom_call.1} parent=1 // pred_check_branch
      %9 = sbr.rel (0) target = $region5
    $region4: #{tpu_custom_call.1} parent=1 // pred_region
      %11 = vsyncadd [#allocation3], 0
      %s13 = sshll.u32 %s0, 4
      %s14 = int_to_ptr.hbm [resolvable:$true] %s13
      %s15 = sshll.u32 [#allocation2], 4
      %s16 = int_to_ptr.vmem [resolvable:$true] %s15
      %18 = dma.hbm_to_vmem [thread:$0]  %s14, 64, %s16, [#allocation3]
    $region5: #{tpu_custom_call.1} parent=1 // pred_fallthru
      _
    // Predicated region
    $region6: #{tpu_custom_call.1} parent=1 // pred_check
      _
    $region7: #{tpu_custom_call.1} parent=1 // pred_check_branch
      %20 = sbr.rel (0) target = $region9
    $region8: #{tpu_custom_call.1} parent=1 // pred_region
      %22 = dma.done [#allocation3], 64
    $region9: #{tpu_custom_call.1} parent=1 // pred_fallthru
      _
    %v23 = vld [vmem:[#allocation2] sm:$0xf]
    %v24 = vunpack.c.l.bf16 %v23
    %v25 = vmul.f32 %v24, 0.17677669
    %v27 = vperm.slane %v25, 0
    %v28 = vperm.slane %v25, 2
    %v29 = vperm.slane %v25, 4
    %v30 = vperm.slane %v25, 6
    %v35 = vpack.c.bf16 %v28, %v27
    %v36 = vpack.c.bf16 %v30, %v29
    %v39 = vrot.slane %v35, 3
    %v40 = vrot.slane %v36, 6
    %v41 = vrot.slane %v36, 1
    %vm42 = vcmask 1040384
    %v45 = vsel %vm42, %v35, %v39
    %vm46 = vcmask 1042434
    %v49 = vsel %vm46, %v40, %v41
    %vm50 = vcmask 1041408
    %v51 = vsel %vm50, %v45, %v49
    %vm53 = vcmask 1040384
    %vm54 = vsmask.f32 256
    %vm55 = vmand %vm53, %vm54
    %vm56 = vcmask 1041409
    %vm57 = vsmask.f32 1280
    %vm58 = vmand %vm56, %vm57
    %vm59 = vmor %vm58, %vm55
    %vm60 = vcmask 1042434
    %vm61 = vsmask.f32 2304
    %vm62 = vmand %vm60, %vm61
    %vm63 = vmor %vm62, %vm59
    %vm64 = vcmask 1043459
    %vm65 = vsmask.f32 3328
    %vm66 = vmand %vm64, %vm65
    %vm67 = vmor %vm66, %vm63
    %v68 = vld [vmem:[#allocation5] sm:$0xf]
    %v69 = vsel %vm67, %v51, %v68
    %70 = vst [vmem:[#allocation5] sm:$0xf] %v69
    // Predicated region
    $region10: #{tpu_custom_call.1} parent=1 // pred_check
      _
    $region11: #{tpu_custom_call.1} parent=1 // pred_check_branch
      %72 = sbr.rel (0) target = $region13
    $region12: #{tpu_custom_call.1} parent=1 // pred_region
      %74 = vsyncadd [#allocation4], 0
      %s76 = sshll.u32 [#allocation5], 4
      %s77 = int_to_ptr.vmem [resolvable:$true] %s76
      %s78 = sshll.u32 %s1, 4
      %s79 = int_to_ptr.hbm [resolvable:$true] %s78
      %81 = dma.vmem_to_hbm [thread:$0]  %s77, 64, %s79, [#allocation4]
    $region13: #{tpu_custom_call.1} parent=1 // pred_fallthru
      _
    // Predicated region
    $region14: #{tpu_custom_call.1} parent=1 // pred_check
      _
    $region15: #{tpu_custom_call.1} parent=1 // pred_check_branch
      %83 = sbr.rel (0) target = $region17
    $region16: #{tpu_custom_call.1} parent=1 // pred_region
      %85 = dma.done [#allocation4], 64
    $region17: #{tpu_custom_call.1} parent=1 // pred_fallthru
      _
    %86 = vsyncpa [#allocation3], 1
    %87 = vsyncpa [#allocation4], 1

</llo_original>
